<compile_context>
chip_gen: v5e
topology: v5e:2x2
jax: 0.10.0
libtpu: 0.0.40
codegen_flags: <defaults>
</compile_context>

<pallas_src>
import math

import jax
import jax.numpy as jnp
from jax.experimental import pallas as pl
from jax.experimental.pallas import tpu as pltpu


def _copy_kernel(x_ref, o_ref):
    # Whole-tile pass-through (VMEM -> VMEM); output aliases the input buffer.
    o_ref[...] = x_ref[...]


# Lane widths tried in order: largest multiple of 128 that divides the total
# element count (lane-dense output = unmasked full-width stores).
_LANE_CANDIDATES = (2048, 1024, 512, 256, 128)


def base_candidate_model_forward(xs: jax.Array,
                                 *,
                                 block_bytes: int = 2 * 1024 * 1024) -> jax.Array:
    """Forward pass of BaseCandidateModel (abstract base): identity on xs.

    xs: arbitrary-shape array (e.g. NCHW (B, C, H, W)).
    returns: array of identical shape/dtype.
    """
    orig_shape = xs.shape
    if xs.ndim == 0 or xs.size == 0:
        return xs  # nothing to tile

    total = math.prod(orig_shape)
    itemsize = jnp.dtype(xs.dtype).itemsize

    lane = next((c for c in _LANE_CANDIDATES if total % c == 0), None)

    if lane is None:
        # Total element count not a multiple of 128: fall back to a single
        # full-extent block over a (leading, last-dim) view.  Block shape
        # equal to the full array dims satisfies the (8, 128) rule.
        rows = math.prod(orig_shape[:-1])
        lane_f = orig_shape[-1]
        x2d = xs.reshape(rows, lane_f)
        out2d = pl.pallas_call(
            _copy_kernel,
            out_shape=jax.ShapeDtypeStruct((rows, lane_f), xs.dtype),
            grid=(1,),
            in_specs=[pl.BlockSpec((rows, lane_f), lambda i: (0, 0))],
            out_specs=pl.BlockSpec((rows, lane_f), lambda i: (0, 0)),
            input_output_aliases={0: 0},
            compiler_params=pltpu.CompilerParams(
                dimension_semantics=("arbitrary",)),
        )(x2d)
        return out2d.reshape(orig_shape)

    # Lane-dense slab: (rows, lane) with lane a big multiple of 128.
    rows = total // lane

    # Sublane alignment per dtype: f32 -> 8, bf16 -> 16, int8/fp8 -> 32.
    sub_align = max(8, 32 // itemsize)

    # ~block_bytes per block => in+out double-buffered footprint is
    # ~4 * block_bytes, comfortably under every chip's scoped VMEM default.
    tile_rows = (block_bytes // (lane * itemsize)) // sub_align * sub_align
    tile_rows = max(sub_align, tile_rows)
    if tile_rows >= rows:
        tile_rows = rows  # full extent on the row axis (always legal)

    grid = (pl.cdiv(rows, tile_rows),)  # Pallas pads/masks a partial last block

    x2d = xs.reshape(rows, lane)  # free (bitcast-level) for contiguous xs
    out2d = pl.pallas_call(
        _copy_kernel,
        out_shape=jax.ShapeDtypeStruct((rows, lane), xs.dtype),
        grid=grid,
        in_specs=[pl.BlockSpec((tile_rows, lane), lambda i: (i, 0))],
        out_specs=pl.BlockSpec((tile_rows, lane), lambda i: (i, 0)),
        input_output_aliases={0: 0},
        compiler_params=pltpu.CompilerParams(
            dimension_semantics=("parallel",)),  # shards across v7x's 2 TCs
    )(x2d)
    return out2d.reshape(orig_shape)


class BaseCandidateModelJAX:
    """Mirror of the PyTorch base class: holds device/parameter, no weights."""

    def __init__(self, device, parameter):
        self.device = device
        self.parameter = parameter

    def forward(self, xs, **kwargs):
        return base_candidate_model_forward(xs, **kwargs)

    # save()/load() intentionally omitted: torch.save/state_dict filesystem
    # glue involves no on-device compute.


if __name__ == "__main__":
    model = BaseCandidateModelJAX(device="tpu", parameter={})

    key = jax.random.PRNGKey(0)
    k0, k1, k2 = jax.random.split(key, 3)

    # 1) Small NCHW input consistent with a conv-style candidate model.
    x = jax.random.normal(k0, (2, 4, 16, 16), dtype=jnp.float32)
    y = jax.block_until_ready(model.forward(x))
    assert y.shape == x.shape and y.dtype == x.dtype
    assert bool(jnp.all(y == x))

    # 2) Slightly larger input with a small block size to exercise the
    #    multi-step pipelined grid (lane-dense slab, several blocks).
    x_big = jax.random.normal(k1, (2, 4, 128, 512), dtype=jnp.float32)
    y_big = jax.block_until_ready(model.forward(x_big, block_bytes=256 * 1024))
    assert y_big.shape == x_big.shape and y_big.dtype == x_big.dtype
    assert bool(jnp.all(y_big == x_big))

    # 3) Odd shape (total not a multiple of 128) to exercise the fallback path.
    x_odd = jax.random.normal(k2, (2, 3, 5, 7), dtype=jnp.float32)
    y_odd = jax.block_until_ready(model.forward(x_odd))
    assert y_odd.shape == x_odd.shape and y_odd.dtype == x_odd.dtype
    assert bool(jnp.all(y_odd == x_odd))

    print("KERNEL_OK")
</pallas_src>

<mosaic_0001>
module attributes {stable_mosaic.version = 11 : i64} {
  func.func @_copy_kernel(%arg0: i32, %arg1: memref<1x2048xf32, #tpu.memory_space<vmem>>, %arg2: memref<1x2048xf32, #tpu.memory_space<vmem>>) attributes {dimension_semantics = [#tpu.dimension_semantics<parallel>], iteration_bounds = array<i64: 1>, scalar_prefetch = 0 : i64, scratch_operands = 0 : i64, tpu.core_type = #tpu.core_type<tc>, window_params = [{transform_indices = @transform_0, window_bounds = array<i64: 1, 2048>}, {transform_indices = @transform_1, window_bounds = array<i64: 1, 2048>}]} {
    %c0 = arith.constant 0 : index
    %c0_0 = arith.constant 0 : index
    %0 = vector.load %arg1[%c0, %c0_0] : memref<1x2048xf32, #tpu.memory_space<vmem>>, vector<1x2048xf32>
    %c0_1 = arith.constant 0 : index
    %c0_2 = arith.constant 0 : index
    %1 = vector.load %arg2[%c0_1, %c0_2] : memref<1x2048xf32, #tpu.memory_space<vmem>>, vector<1x2048xf32>
    tpu.vector_store %arg2[%c0_1, %c0_2], %0 {strides = array<i32>} : memref<1x2048xf32, #tpu.memory_space<vmem>>, vector<1x2048xf32>,
    return
  }
  func.func @transform_0(%arg0: i32) -> (i32, i32) {
    %c0_i32 = arith.constant 0 : i32
    %c0_i32_0 = arith.constant 0 : i32
    return %arg0, %c0_i32 : i32, i32
  }
  func.func @transform_1(%arg0: i32) -> (i32, i32) {
    %c0_i32 = arith.constant 0 : i32
    %c0_i32_0 = arith.constant 0 : i32
    return %arg0, %c0_i32 : i32, i32
  }
}

</mosaic_0001>

<llo_original>
// kernel: tpu_custom_call.1
$region0: #{tpu_custom_call.1}
  #allocation0 [shape = 'u32[]', space=smem, size = 0x4, offset = 0x4, fixed_abs, tag = 'smem constant byte address 0x4 - core index']
  #allocation1 [shape = 'u32[72,128]{1,0:T(1,128)}', space=vmem, size = 0x9000, scoped, tag = 'internal scratch']
  %s0 = inlined_call_operand.hbm [shape: f32[1,2048], index: 0, kind: input, shape index: {}, may-alias: {0,1}]
  %s1 = inlined_call_operand.hbm [shape: f32[1,2048], index: 1, kind: output, shape index: {}, may-alias: {0,1}]
  %s2 = sld [smem:[#allocation0]]
  $region18: #{tpu_custom_call.1} parent=0
    _
  %s4 = ssub.s32 1, %s2
  %s5 = scalar_select 0, %s4, %s2
  $region1: #{tpu_custom_call.1} parent=0
    #allocation2 [shape = 'u8[8192]{0}', space=vmem, size = 0x2000, scoped, tag = 'input window, operand 0, single buffered']
    #allocation3 [shape = 's32[1]{0}', space=sflag, size = 0x4, scoped, tag = 'scoped memory for tpu_custom_call.1']
    #allocation4 [shape = 's32[1]{0}', space=sflag, size = 0x4, scoped, tag = 'scoped memory for tpu_custom_call.1']
    #allocation5 [shape = 'u8[8192]{0}', space=vmem, size = 0x2000, scoped, tag = 'output window, operand 0, single buffered']
    %6 = vsyncpa [#allocation3], 0
    %7 = vsyncpa [#allocation4], 0
    // Predicated region
    $region2: #{tpu_custom_call.1} parent=1 // pred_check
      _
    $region3: #{tpu_custom_call.1} parent=1 // pred_check_branch
      %9 = sbr.rel (0) target = $region5
    $region4: #{tpu_custom_call.1} parent=1 // pred_region
      %11 = vsyncadd [#allocation3], 0
      %s13 = sshll.u32 %s0, 4
      %s14 = int_to_ptr.hbm [resolvable:$true] %s13
      %s15 = sshll.u32 [#allocation2], 4
      %s16 = int_to_ptr.vmem [resolvable:$true] %s15
      %18 = dma.hbm_to_vmem [thread:$0]  %s14, 256, %s16, [#allocation3]
    $region5: #{tpu_custom_call.1} parent=1 // pred_fallthru
      _
    // Predicated region
    $region6: #{tpu_custom_call.1} parent=1 // pred_check
      _
    $region7: #{tpu_custom_call.1} parent=1 // pred_check_branch
      %20 = sbr.rel (0) target = $region9
    $region8: #{tpu_custom_call.1} parent=1 // pred_region
      %22 = dma.done [#allocation3], 256
    $region9: #{tpu_custom_call.1} parent=1 // pred_fallthru
      _
    %v23 = vld [vmem:[#allocation2] sm:$0xff]
    %v24 = vld [vmem:[#allocation2 + $0x8] sm:$0xff]
    %25 = vst [vmem:[#allocation5] sm:$0xff] %v23
    %26 = vst [vmem:[#allocation5 + $0x8] sm:$0xff] %v24
    // Predicated region
    $region10: #{tpu_custom_call.1} parent=1 // pred_check
      _
    $region11: #{tpu_custom_call.1} parent=1 // pred_check_branch
      %28 = sbr.rel (0) target = $region13
    $region12: #{tpu_custom_call.1} parent=1 // pred_region
      %30 = vsyncadd [#allocation4], 0
      %s32 = sshll.u32 [#allocation5], 4
      %s33 = int_to_ptr.vmem [resolvable:$true] %s32
      %s34 = sshll.u32 %s1, 4
      %s35 = int_to_ptr.hbm [resolvable:$true] %s34
      %37 = dma.vmem_to_hbm [thread:$0]  %s33, 256, %s35, [#allocation4]
    $region13: #{tpu_custom_call.1} parent=1 // pred_fallthru
      _
    // Predicated region
    $region14: #{tpu_custom_call.1} parent=1 // pred_check
      _
    $region15: #{tpu_custom_call.1} parent=1 // pred_check_branch
      %39 = sbr.rel (0) target = $region17
    $region16: #{tpu_custom_call.1} parent=1 // pred_region
      %41 = dma.done [#allocation4], 256
    $region17: #{tpu_custom_call.1} parent=1 // pred_fallthru
      _
    %42 = vsyncpa [#allocation3], 1
    %43 = vsyncpa [#allocation4], 1

</llo_original>
